<compile_context>
chip_gen: v5e
topology: v5e:2x2
jax: 0.10.0
libtpu: 0.0.40
codegen_flags: <defaults>
</compile_context>

<pallas_src>
import jax
import jax.numpy as jnp
import numpy as np
from jax.experimental import pallas as pl
from jax.experimental.pallas import tpu as pltpu

LN_EPS = 1e-5

# Row order inside the packed (12, VW) bias / LayerNorm-affine array.
_B3, _B4, _B5, _B6, _B1, _B2, _G1, _BE1, _G2, _BE2, _G3, _BE3 = range(12)


def decoder_ffn_kernel(
    x_l_ref,            # (Bb*E, P)  f32  x with rows=(batch, d_model), lanes=pred_len
    cross_ref,          # (Bb, D, E) f32
    w3t_ref, w4t_ref,   # (P, 2P), (2P, P)  bf16   pred_len channel mixing
    w5t_ref, w6t_ref,   # (D, 2D), (2D, E)  bf16   DL_size channel mixing
    w1t_ref, w2t_ref,   # (E, F),  (F, E)   bf16   d_model FFN
    vec_ref,            # (12, VW) f32  packed biases + LayerNorm affines
    out_ref,            # (Bb, P, E) f32
):
    f32, bf16 = jnp.float32, jnp.bfloat16
    Bb, P, E = out_ref.shape
    D = cross_ref.shape[1]
    P2 = w3t_ref.shape[1]      # 2 * pred_len
    D2 = w5t_ref.shape[1]      # 2 * DL_size
    F = w1t_ref.shape[1]       # d_ff
    R = Bb * P

    vec = vec_ref[...]

    def row(i, n):             # (1, n) f32, static slice of the packed vectors
        return vec[i:i + 1, :n]

    def ln(v, g, b):           # f32 LayerNorm over the last (lane) axis
        mu = jnp.mean(v, axis=-1, keepdims=True)
        var = jnp.mean((v - mu) ** 2, axis=-1, keepdims=True)
        return (v - mu) * jax.lax.rsqrt(var + LN_EPS) * g + b

    def mm(a, w_ref):          # rows @ lane-dense weight; bf16 MXU, f32 accumulation
        return jnp.dot(a.astype(bf16), w_ref[...], preferred_element_type=f32)

    # ---- conv3 -> relu -> conv4 as two single wide 2-D matmuls (no weight
    #      broadcast, no per-batch MXU passes): pred_len channels live on lanes.
    xl = x_l_ref[...]                                          # (Bb*E, P) f32
    h = jnp.maximum(mm(xl, w3t_ref) + row(_B3, P2), 0.0)       # (Bb*E, 2P)
    x4l = mm(h, w4t_ref) + row(_B4, P)                         # (Bb*E, P)
    resid_l = x4l + xl                                         # residual, same layout

    # Single relayout back to row-major (batch, pred_len, d_model): one
    # minor-dims transpose; the XLU slot is otherwise idle in this kernel.
    x_rm = jnp.transpose(resid_l.reshape(Bb, E, P), (0, 2, 1))     # (Bb, P, E)
    x_ = ln(x_rm.reshape(R, E), row(_G1, E), row(_BE1, E))         # (R, E) f32

    # ---- scores[b,p,d] = sum_e x_[b,p,e] * cross[b,d,e]   (activation x activation)
    scores = jnp.einsum(
        "bpe,bde->bpd",
        x_.reshape(Bb, P, E).astype(bf16),
        cross_ref[...].astype(bf16),
        preferred_element_type=f32)                                # (Bb, P, D)
    sf = scores.reshape(R, D)

    # ---- conv5 -> relu -> conv6 (DL_size channels on lanes), +x_, norm2
    s5 = jnp.maximum(mm(sf, w5t_ref) + row(_B5, D2), 0.0)          # (R, 2D)
    s6 = mm(s5, w6t_ref) + row(_B6, E)                             # (R, E)
    s = ln(s6 + x_, row(_G2, E), row(_BE2, E))                     # (R, E)

    # ---- conv1 -> relu -> conv2 FFN over d_model (lanes), +s, norm3
    y1 = jnp.maximum(mm(s, w1t_ref) + row(_B1, F), 0.0)            # (R, F)
    y2 = mm(y1, w2t_ref) + row(_B2, E)                             # (R, E)
    out = ln(s + y2, row(_G3, E), row(_BE3, E))                    # (R, E)

    out_ref[...] = out.reshape(Bb, P, E).astype(out_ref.dtype)


# ----------------------------- wrapper helpers -----------------------------

def _round_up(v, m):
    return ((v + m - 1) // m) * m


def _vmem_capacity_bytes():
    try:
        return int(pltpu.get_tpu_info().vmem_capacity_bytes)
    except Exception:
        return 64 << 20                     # safe floor (v7x has 64 MiB per TC)


def _num_tensorcores():
    try:
        dev = jax.devices()[0]
        n = getattr(dev, "num_cores", None)
        if isinstance(n, int) and n > 0:
            return max(1, min(int(n), 2))
        kind = (getattr(dev, "device_kind", "") or "").lower()
        if "v7" in kind:
            return 2
    except Exception:
        pass
    return 1


def _vmem_step_bytes(block_b, P, D, E, F):
    """Rough padded-VMEM footprint of one grid step (double-buffered activation
    blocks + live intermediates), used only to budget block_b / vmem_limit."""
    lane = lambda n: _round_up(n, 128)
    sub = lambda n: _round_up(n, 8)
    L = block_b * E          # rows of the lane-channel view
    R = block_b * P          # row-major rows
    f32b = 4
    blocks = 2 * (sub(L) * lane(P)                          # x (lane-channel view)
                  + block_b * sub(D) * lane(E)              # cross
                  + block_b * sub(P) * lane(E)) * f32b      # out
    inter = (3 * sub(L) * lane(2 * P)
             + 7 * sub(R) * lane(E)
             + sub(R) * (lane(D) + lane(2 * D) + lane(F))) * f32b
    return blocks + inter


def _pick_block_b(B, P, D, E, F, num_tc, vmem_budget, row_cap=2048):
    """Largest batch slice per grid step s.t. the grid still has >= one step per
    TensorCore, block tiling stays (8,128)-legal, rows/step <= row_cap, and the
    estimated working set fits the VMEM budget."""
    best = 1
    min_steps = min(num_tc, B)
    for d in range(1, B + 1):
        if B % d:
            continue
        if (B // d) < min_steps:
            continue
        if d != B and (d * E) % 8:
            continue
        if d * P > row_cap:
            continue
        if _vmem_step_bytes(d, P, D, E, F) > vmem_budget:
            continue
        best = d
    return best


def decoder_layer_ffn(x, cross, params, *, block_b=None):
    """x: (B, P, E) f32, cross: (B, D, E) f32 -> (B, P, E) f32 (dropout = identity)."""
    B, P, E = x.shape
    D = cross.shape[1]
    F = params["w1"].shape[0]
    f32, bf16 = jnp.float32, jnp.bfloat16

    vmem_cap = _vmem_capacity_bytes()
    num_tc = _num_tensorcores()
    if block_b is None:
        block_b = _pick_block_b(B, P, D, E, F, num_tc,
                                vmem_budget=min(vmem_cap, 128 << 20) // 2)
    assert B % block_b == 0, "batch must be divisible by block_b"

    # Lane-channel view of x (rows = (batch, d_model), lanes = pred_len): XLA
    # transpose outside the kernel; lets conv3/conv4 be single wide matmuls.
    x_l = jnp.transpose(x.astype(f32), (0, 2, 1)).reshape(B * E, P)

    # Pre-transposed bf16 weights: every in-kernel matmul is rows @ lane-dense weight.
    w3t = params["w3"].T.astype(bf16)   # (P, 2P)
    w4t = params["w4"].T.astype(bf16)   # (2P, P)
    w5t = params["w5"].T.astype(bf16)   # (D, 2D)
    w6t = params["w6"].T.astype(bf16)   # (2D, E)
    w1t = params["w1"].T.astype(bf16)   # (E, F)
    w2t = params["w2"].T.astype(bf16)   # (F, E)

    # One packed (12, VW) f32 array for all biases + LayerNorm affines.
    vec_rows = [params["b3"], params["b4"], params["b5"], params["b6"],
                params["b1"], params["b2"],
                params["g1"], params["be1"], params["g2"], params["be2"],
                params["g3"], params["be3"]]
    VW = max(int(v.shape[0]) for v in vec_rows)
    packed = jnp.stack(
        [jnp.pad(v.astype(f32), (0, VW - int(v.shape[0]))) for v in vec_rows])   # (12, VW)

    weights = [w3t, w4t, w5t, w6t, w1t, w2t, packed]

    in_specs = [
        pl.BlockSpec((block_b * E, P), lambda i: (i, 0)),        # x (lane-channel view)
        pl.BlockSpec((block_b, D, E), lambda i: (i, 0, 0)),      # cross
    ] + [pl.BlockSpec(w.shape, lambda i: (0, 0)) for w in weights]
    out_spec = pl.BlockSpec((block_b, P, E), lambda i: (i, 0, 0))

    # Generation-aware VMEM budget: per-step resident set (params counted once per
    # buffer, no double count with blocks), clamped under physical capacity.
    param_bytes = sum(int(w.size) * w.dtype.itemsize for w in weights)
    step_bytes = _vmem_step_bytes(block_b, P, D, E, F) + 2 * param_bytes
    vmem_limit = int(min(max(step_bytes + (8 << 20), 32 << 20), vmem_cap - (8 << 20)))

    flops = 2 * B * (E * P * 2 * P + E * 2 * P * P        # conv3, conv4
                     + P * E * D                          # scores
                     + P * D * 2 * D + P * 2 * D * E      # conv5, conv6
                     + P * E * F + P * F * E)             # conv1, conv2
    cost = pl.CostEstimate(
        flops=int(flops),
        transcendentals=int(3 * B * P),                   # one rsqrt per row per LayerNorm
        bytes_accessed=int((2 * B * P * E + B * D * E) * 4 + param_bytes),
    )

    return pl.pallas_call(
        decoder_ffn_kernel,
        out_shape=jax.ShapeDtypeStruct((B, P, E), f32),
        grid_spec=pl.GridSpec(
            grid=(B // block_b,),
            in_specs=in_specs,
            out_specs=out_spec,
        ),
        compiler_params=pltpu.CompilerParams(
            dimension_semantics=("parallel",),
            vmem_limit_bytes=vmem_limit,
        ),
        cost_estimate=cost,
    )(x_l, cross.astype(f32), *weights)


# ----------------------------- params / reference -----------------------------

def init_params(key, pred_len, dl_size, d_model, d_ff):
    """Deterministic synthetic parameters. Conv1d(k=1) weights stored (out, in);
    biases and LayerNorm affines stored 1-D (the wrapper does layout plumbing)."""
    ks = jax.random.split(key, 12)
    P, D, E, F = pred_len, dl_size, d_model, d_ff

    def w(k, o, i):
        return (jax.random.normal(k, (o, i), jnp.float32) / np.sqrt(i)).astype(jnp.float32)

    def b(k, o):
        return (jax.random.normal(k, (o,), jnp.float32) * 0.02).astype(jnp.float32)

    return {
        "w3": w(ks[0], 2 * P, P), "b3": b(ks[1], 2 * P),
        "w4": w(ks[2], P, 2 * P), "b4": b(ks[3], P),
        "w5": w(ks[4], 2 * D, D), "b5": b(ks[5], 2 * D),
        "w6": w(ks[6], E, 2 * D), "b6": b(ks[7], E),
        "w1": w(ks[8], F, E),     "b1": b(ks[9], F),
        "w2": w(ks[10], E, F),    "b2": b(ks[11], E),
        "g1": jnp.ones((E,), jnp.float32), "be1": jnp.zeros((E,), jnp.float32),
        "g2": jnp.ones((E,), jnp.float32), "be2": jnp.zeros((E,), jnp.float32),
        "g3": jnp.ones((E,), jnp.float32), "be3": jnp.zeros((E,), jnp.float32),
    }


def reference(x, cross, p, matmul_dtype=jnp.float32):
    """Pure-JAX reference mirroring the PyTorch forward (dropout = identity).
    matmul_dtype=bfloat16 emulates the kernel's bf16 MXU operands (f32 accum)."""
    md, f32 = matmul_dtype, jnp.float32

    def ln(v, g, b):
        mu = jnp.mean(v, axis=-1, keepdims=True)
        var = jnp.mean((v - mu) ** 2, axis=-1, keepdims=True)
        return (v - mu) / jnp.sqrt(var + LN_EPS) * g + b

    def ee(eq, a, b):
        return jnp.einsum(eq, a.astype(md), b.astype(md), preferred_element_type=f32)

    h = jax.nn.relu(ee("op,bpe->boe", p["w3"], x) + p["b3"][None, :, None])
    x_ = ee("op,bpe->boe", p["w4"], h) + p["b4"][None, :, None]
    x_ = ln(x_ + x, p["g1"], p["be1"])

    scores = ee("bpe,bde->bpd", x_, cross)

    st = jnp.swapaxes(scores, 1, 2)                                        # (B, D, P)
    s5 = jax.nn.relu(ee("od,bdp->bop", p["w5"], st) + p["b5"][None, :, None])
    s6 = ee("oc,bcp->bop", p["w6"], s5) + p["b6"][None, :, None]           # (B, E, P)
    s = ln(jnp.swapaxes(s6, 1, 2) + x_, p["g2"], p["be2"])

    yt = jnp.swapaxes(s, 1, 2)                                             # (B, E, P)
    y1 = jax.nn.relu(ee("oe,bep->bop", p["w1"], yt) + p["b1"][None, :, None])
    y2 = ee("of,bfp->bop", p["w2"], y1) + p["b2"][None, :, None]           # (B, E, P)
    y = jnp.swapaxes(y2, 1, 2)
    return ln(s + y, p["g3"], p["be3"])


if __name__ == "__main__":
    B, PRED_LEN, DL_SIZE, D_MODEL, D_FF = 2, 8, 8, 32, 64

    key = jax.random.PRNGKey(0)
    kx, kc, kp = jax.random.split(key, 3)
    x = jax.random.normal(kx, (B, PRED_LEN, D_MODEL), jnp.float32)
    cross = jax.random.normal(kc, (B, DL_SIZE, D_MODEL), jnp.float32)
    params = init_params(kp, PRED_LEN, DL_SIZE, D_MODEL, D_FF)

    out = jax.block_until_ready(decoder_layer_ffn(x, cross, params))

    # Tight check vs a reference emulating the kernel's bf16 MXU operands.
    ref_bf16 = jax.block_until_ready(reference(x, cross, params, jnp.bfloat16))
    np.testing.assert_allclose(np.asarray(out), np.asarray(ref_bf16), atol=5e-3, rtol=5e-3)

    # Loose check vs exact f32 PyTorch-equivalent math (bounds bf16 MXU noise).
    ref_f32 = jax.block_until_ready(reference(x, cross, params, jnp.float32))
    np.testing.assert_allclose(np.asarray(out), np.asarray(ref_f32), atol=2e-1, rtol=2e-1)

    print("KERNEL_OK")
</pallas_src>

<mosaic_0001>
module attributes {stable_mosaic.version = 11 : i64} {
  func.func @decoder_ffn_kernel(%arg0: i32, %arg1: memref<64x8xf32, #tpu.memory_space<vmem>>, %arg2: memref<2x8x32xf32, #tpu.memory_space<vmem>>, %arg3: memref<8x16xbf16, #tpu.memory_space<vmem>>, %arg4: memref<16x8xbf16, #tpu.memory_space<vmem>>, %arg5: memref<8x16xbf16, #tpu.memory_space<vmem>>, %arg6: memref<16x32xbf16, #tpu.memory_space<vmem>>, %arg7: memref<32x64xbf16, #tpu.memory_space<vmem>>, %arg8: memref<64x32xbf16, #tpu.memory_space<vmem>>, %arg9: memref<12x64xf32, #tpu.memory_space<vmem>>, %arg10: memref<2x8x32xf32, #tpu.memory_space<vmem>>) attributes {dimension_semantics = [#tpu.dimension_semantics<parallel>], iteration_bounds = array<i64: 1>, scalar_prefetch = 0 : i64, scratch_operands = 0 : i64, tpu.core_type = #tpu.core_type<tc>, window_params = [{transform_indices = @transform_0, window_bounds = array<i64: 64, 8>}, {transform_indices = @transform_1, window_bounds = array<i64: 2, 8, 32>}, {pipeline_mode = #tpu.pipeline_mode<synchronous>, transform_indices = @transform_2, window_bounds = array<i64: 8, 16>}, {pipeline_mode = #tpu.pipeline_mode<synchronous>, transform_indices = @transform_3, window_bounds = array<i64: 16, 8>}, {pipeline_mode = #tpu.pipeline_mode<synchronous>, transform_indices = @transform_4, window_bounds = array<i64: 8, 16>}, {pipeline_mode = #tpu.pipeline_mode<synchronous>, transform_indices = @transform_5, window_bounds = array<i64: 16, 32>}, {pipeline_mode = #tpu.pipeline_mode<synchronous>, transform_indices = @transform_6, window_bounds = array<i64: 32, 64>}, {pipeline_mode = #tpu.pipeline_mode<synchronous>, transform_indices = @transform_7, window_bounds = array<i64: 64, 32>}, {pipeline_mode = #tpu.pipeline_mode<synchronous>, transform_indices = @transform_8, window_bounds = array<i64: 12, 64>}, {transform_indices = @transform_9, window_bounds = array<i64: 2, 8, 32>}]} {
    %c0 = arith.constant 0 : index
    %c0_0 = arith.constant 0 : index
    %0 = vector.load %arg9[%c0, %c0_0] : memref<12x64xf32, #tpu.memory_space<vmem>>, vector<12x64xf32>
    %c0_1 = arith.constant 0 : index
    %c0_2 = arith.constant 0 : index
    %1 = vector.load %arg1[%c0_1, %c0_2] : memref<64x8xf32, #tpu.memory_space<vmem>>, vector<64x8xf32>
    %2 = arith.truncf %1 : vector<64x8xf32> to vector<64x8xbf16>
    %c0_3 = arith.constant 0 : index
    %c0_4 = arith.constant 0 : index
    %3 = vector.load %arg3[%c0_3, %c0_4] : memref<8x16xbf16, #tpu.memory_space<vmem>>, vector<8x16xbf16>
    %cst = arith.constant dense<0.000000e+00> : vector<64x16xf32>
    %4 = tpu.matmul %2, %3, %cst {dimension_numbers = #tpu.dot_dimension_numbers<[1], [0], [0], [1], [0, 0, 1, 1], [], []>} : vector<64x8xbf16>, vector<8x16xbf16>, vector<64x16xf32> -> vector<64x16xf32>
    %5 = vector.extract_strided_slice %0 {offsets = [0, 0], sizes = [1, 16], strides = [1, 1]} : vector<12x64xf32> to vector<1x16xf32>
    %6 = vector.broadcast %5 : vector<1x16xf32> to vector<64x16xf32>
    %7 = arith.addf %4, %6 : vector<64x16xf32>
    %cst_5 = arith.constant 0.000000e+00 : f32
    %8 = vector.broadcast %cst_5 : f32 to vector<64x16xf32>
    %9 = arith.maximumf %7, %8 : vector<64x16xf32>
    %10 = arith.truncf %9 : vector<64x16xf32> to vector<64x16xbf16>
    %c0_6 = arith.constant 0 : index
    %c0_7 = arith.constant 0 : index
    %11 = vector.load %arg4[%c0_6, %c0_7] : memref<16x8xbf16, #tpu.memory_space<vmem>>, vector<16x8xbf16>
    %cst_8 = arith.constant dense<0.000000e+00> : vector<64x8xf32>
    %12 = tpu.matmul %10, %11, %cst_8 {dimension_numbers = #tpu.dot_dimension_numbers<[1], [0], [0], [1], [0, 0, 1, 1], [], []>} : vector<64x16xbf16>, vector<16x8xbf16>, vector<64x8xf32> -> vector<64x8xf32>
    %13 = vector.extract_strided_slice %0 {offsets = [1, 0], sizes = [1, 8], strides = [1, 1]} : vector<12x64xf32> to vector<1x8xf32>
    %14 = vector.broadcast %13 : vector<1x8xf32> to vector<64x8xf32>
    %15 = arith.addf %12, %14 : vector<64x8xf32>
    %16 = arith.addf %15, %1 : vector<64x8xf32>
    %17 = vector.shape_cast %16 : vector<64x8xf32> to vector<2x32x8xf32>
    %18 = tpu.transpose %17, [0, 2, 1] : vector<2x32x8xf32> -> vector<2x8x32xf32>
    %19 = vector.shape_cast %18 : vector<2x8x32xf32> to vector<16x32xf32>
    %20 = vector.extract_strided_slice %0 {offsets = [6, 0], sizes = [1, 32], strides = [1, 1]} : vector<12x64xf32> to vector<1x32xf32>
    %21 = vector.extract_strided_slice %0 {offsets = [7, 0], sizes = [1, 32], strides = [1, 1]} : vector<12x64xf32> to vector<1x32xf32>
    %cst_9 = arith.constant dense<0.000000e+00> : vector<16xf32>
    %22 = vector.multi_reduction <add>, %19, %cst_9 [1] : vector<16x32xf32> to vector<16xf32>
    %23 = vector.shape_cast %22 : vector<16xf32> to vector<16x1xf32>
    %cst_10 = arith.constant 3.200000e+01 : f32
    %24 = vector.broadcast %cst_10 : f32 to vector<16x1xf32>
    %25 = arith.divf %23, %24 : vector<16x1xf32>
    %26 = vector.broadcast %25 : vector<16x1xf32> to vector<16x32xf32>
    %27 = arith.subf %19, %26 : vector<16x32xf32>
    %28 = arith.mulf %27, %27 : vector<16x32xf32>
    %cst_11 = arith.constant dense<0.000000e+00> : vector<16xf32>
    %29 = vector.multi_reduction <add>, %28, %cst_11 [1] : vector<16x32xf32> to vector<16xf32>
    %30 = vector.shape_cast %29 : vector<16xf32> to vector<16x1xf32>
    %cst_12 = arith.constant 3.200000e+01 : f32
    %31 = vector.broadcast %cst_12 : f32 to vector<16x1xf32>
    %32 = arith.divf %30, %31 : vector<16x1xf32>
    %33 = vector.broadcast %25 : vector<16x1xf32> to vector<16x32xf32>
    %34 = arith.subf %19, %33 : vector<16x32xf32>
    %cst_13 = arith.constant 9.99999974E-6 : f32
    %35 = vector.broadcast %cst_13 : f32 to vector<16x1xf32>
    %36 = arith.addf %32, %35 : vector<16x1xf32>
    %37 = math.rsqrt %36 : vector<16x1xf32>
    %38 = vector.broadcast %37 : vector<16x1xf32> to vector<16x32xf32>
    %39 = arith.mulf %34, %38 : vector<16x32xf32>
    %40 = vector.broadcast %20 : vector<1x32xf32> to vector<16x32xf32>
    %41 = arith.mulf %39, %40 : vector<16x32xf32>
    %42 = vector.broadcast %21 : vector<1x32xf32> to vector<16x32xf32>
    %43 = arith.addf %41, %42 : vector<16x32xf32>
    %44 = vector.shape_cast %43 : vector<16x32xf32> to vector<2x8x32xf32>
    %45 = arith.truncf %44 : vector<2x8x32xf32> to vector<2x8x32xbf16>
    %c0_14 = arith.constant 0 : index
    %c0_15 = arith.constant 0 : index
    %c0_16 = arith.constant 0 : index
    %46 = vector.load %arg2[%c0_14, %c0_15, %c0_16] : memref<2x8x32xf32, #tpu.memory_space<vmem>>, vector<2x8x32xf32>
    %47 = arith.truncf %46 : vector<2x8x32xf32> to vector<2x8x32xbf16>
    "tpu.trace_start"() <{level = 10 : i32, message = "bpe,bde->bpd"}> : () -> ()
    %cst_17 = arith.constant dense<0.000000e+00> : vector<2x8x8xf32>
    %48 = tpu.matmul %45, %47, %cst_17 {dimension_numbers = #tpu.dot_dimension_numbers<[2], [2], [1], [1], [0, 0, 0, 1, 1, 1], [0], [0]>} : vector<2x8x32xbf16>, vector<2x8x32xbf16>, vector<2x8x8xf32> -> vector<2x8x8xf32>
    "tpu.trace_stop"() : () -> ()
    %49 = vector.shape_cast %48 : vector<2x8x8xf32> to vector<16x8xf32>
    %50 = arith.truncf %49 : vector<16x8xf32> to vector<16x8xbf16>
    %c0_18 = arith.constant 0 : index
    %c0_19 = arith.constant 0 : index
    %51 = vector.load %arg5[%c0_18, %c0_19] : memref<8x16xbf16, #tpu.memory_space<vmem>>, vector<8x16xbf16>
    %cst_20 = arith.constant dense<0.000000e+00> : vector<16x16xf32>
    %52 = tpu.matmul %50, %51, %cst_20 {dimension_numbers = #tpu.dot_dimension_numbers<[1], [0], [0], [1], [0, 0, 1, 1], [], []>} : vector<16x8xbf16>, vector<8x16xbf16>, vector<16x16xf32> -> vector<16x16xf32>
    %53 = vector.extract_strided_slice %0 {offsets = [2, 0], sizes = [1, 16], strides = [1, 1]} : vector<12x64xf32> to vector<1x16xf32>
    %54 = vector.broadcast %53 : vector<1x16xf32> to vector<16x16xf32>
    %55 = arith.addf %52, %54 : vector<16x16xf32>
    %cst_21 = arith.constant 0.000000e+00 : f32
    %56 = vector.broadcast %cst_21 : f32 to vector<16x16xf32>
    %57 = arith.maximumf %55, %56 : vector<16x16xf32>
    %58 = arith.truncf %57 : vector<16x16xf32> to vector<16x16xbf16>
    %c0_22 = arith.constant 0 : index
    %c0_23 = arith.constant 0 : index
    %59 = vector.load %arg6[%c0_22, %c0_23] : memref<16x32xbf16, #tpu.memory_space<vmem>>, vector<16x32xbf16>
    %cst_24 = arith.constant dense<0.000000e+00> : vector<16x32xf32>
    %60 = tpu.matmul %58, %59, %cst_24 {dimension_numbers = #tpu.dot_dimension_numbers<[1], [0], [0], [1], [0, 0, 1, 1], [], []>} : vector<16x16xbf16>, vector<16x32xbf16>, vector<16x32xf32> -> vector<16x32xf32>
    %61 = vector.extract_strided_slice %0 {offsets = [3, 0], sizes = [1, 32], strides = [1, 1]} : vector<12x64xf32> to vector<1x32xf32>
    %62 = vector.broadcast %61 : vector<1x32xf32> to vector<16x32xf32>
    %63 = arith.addf %60, %62 : vector<16x32xf32>
    %64 = arith.addf %63, %43 : vector<16x32xf32>
    %65 = vector.extract_strided_slice %0 {offsets = [8, 0], sizes = [1, 32], strides = [1, 1]} : vector<12x64xf32> to vector<1x32xf32>
    %66 = vector.extract_strided_slice %0 {offsets = [9, 0], sizes = [1, 32], strides = [1, 1]} : vector<12x64xf32> to vector<1x32xf32>
    %cst_25 = arith.constant dense<0.000000e+00> : vector<16xf32>
    %67 = vector.multi_reduction <add>, %64, %cst_25 [1] : vector<16x32xf32> to vector<16xf32>
    %68 = vector.shape_cast %67 : vector<16xf32> to vector<16x1xf32>
    %cst_26 = arith.constant 3.200000e+01 : f32
    %69 = vector.broadcast %cst_26 : f32 to vector<16x1xf32>
    %70 = arith.divf %68, %69 : vector<16x1xf32>
    %71 = vector.broadcast %70 : vector<16x1xf32> to vector<16x32xf32>
    %72 = arith.subf %64, %71 : vector<16x32xf32>
    %73 = arith.mulf %72, %72 : vector<16x32xf32>
    %cst_27 = arith.constant dense<0.000000e+00> : vector<16xf32>
    %74 = vector.multi_reduction <add>, %73, %cst_27 [1] : vector<16x32xf32> to vector<16xf32>
    %75 = vector.shape_cast %74 : vector<16xf32> to vector<16x1xf32>
    %cst_28 = arith.constant 3.200000e+01 : f32
    %76 = vector.broadcast %cst_28 : f32 to vector<16x1xf32>
    %77 = arith.divf %75, %76 : vector<16x1xf32>
    %78 = vector.broadcast %70 : vector<16x1xf32> to vector<16x32xf32>
    %79 = arith.subf %64, %78 : vector<16x32xf32>
    %cst_29 = arith.constant 9.99999974E-6 : f32
    %80 = vector.broadcast %cst_29 : f32 to vector<16x1xf32>
    %81 = arith.addf %77, %80 : vector<16x1xf32>
    %82 = math.rsqrt %81 : vector<16x1xf32>
    %83 = vector.broadcast %82 : vector<16x1xf32> to vector<16x32xf32>
    %84 = arith.mulf %79, %83 : vector<16x32xf32>
    %85 = vector.broadcast %65 : vector<1x32xf32> to vector<16x32xf32>
    %86 = arith.mulf %84, %85 : vector<16x32xf32>
    %87 = vector.broadcast %66 : vector<1x32xf32> to vector<16x32xf32>
    %88 = arith.addf %86, %87 : vector<16x32xf32>
    %89 = arith.truncf %88 : vector<16x32xf32> to vector<16x32xbf16>
    %c0_30 = arith.constant 0 : index
    %c0_31 = arith.constant 0 : index
    %90 = vector.load %arg7[%c0_30, %c0_31] : memref<32x64xbf16, #tpu.memory_space<vmem>>, vector<32x64xbf16>
    %cst_32 = arith.constant dense<0.000000e+00> : vector<16x64xf32>
    %91 = tpu.matmul %89, %90, %cst_32 {dimension_numbers = #tpu.dot_dimension_numbers<[1], [0], [0], [1], [0, 0, 1, 1], [], []>} : vector<16x32xbf16>, vector<32x64xbf16>, vector<16x64xf32> -> vector<16x64xf32>
    %92 = vector.extract_strided_slice %0 {offsets = [4, 0], sizes = [1, 64], strides = [1, 1]} : vector<12x64xf32> to vector<1x64xf32>
    %93 = vector.broadcast %92 : vector<1x64xf32> to vector<16x64xf32>
    %94 = arith.addf %91, %93 : vector<16x64xf32>
    %cst_33 = arith.constant 0.000000e+00 : f32
    %95 = vector.broadcast %cst_33 : f32 to vector<16x64xf32>
    %96 = arith.maximumf %94, %95 : vector<16x64xf32>
    %97 = arith.truncf %96 : vector<16x64xf32> to vector<16x64xbf16>
    %c0_34 = arith.constant 0 : index
    %c0_35 = arith.constant 0 : index
    %98 = vector.load %arg8[%c0_34, %c0_35] : memref<64x32xbf16, #tpu.memory_space<vmem>>, vector<64x32xbf16>
    %cst_36 = arith.constant dense<0.000000e+00> : vector<16x32xf32>
    %99 = tpu.matmul %97, %98, %cst_36 {dimension_numbers = #tpu.dot_dimension_numbers<[1], [0], [0], [1], [0, 0, 1, 1], [], []>} : vector<16x64xbf16>, vector<64x32xbf16>, vector<16x32xf32> -> vector<16x32xf32>
    %100 = vector.extract_strided_slice %0 {offsets = [5, 0], sizes = [1, 32], strides = [1, 1]} : vector<12x64xf32> to vector<1x32xf32>
    %101 = vector.broadcast %100 : vector<1x32xf32> to vector<16x32xf32>
    %102 = arith.addf %99, %101 : vector<16x32xf32>
    %103 = arith.addf %88, %102 : vector<16x32xf32>
    %104 = vector.extract_strided_slice %0 {offsets = [10, 0], sizes = [1, 32], strides = [1, 1]} : vector<12x64xf32> to vector<1x32xf32>
    %105 = vector.extract_strided_slice %0 {offsets = [11, 0], sizes = [1, 32], strides = [1, 1]} : vector<12x64xf32> to vector<1x32xf32>
    %cst_37 = arith.constant dense<0.000000e+00> : vector<16xf32>
    %106 = vector.multi_reduction <add>, %103, %cst_37 [1] : vector<16x32xf32> to vector<16xf32>
    %107 = vector.shape_cast %106 : vector<16xf32> to vector<16x1xf32>
    %cst_38 = arith.constant 3.200000e+01 : f32
    %108 = vector.broadcast %cst_38 : f32 to vector<16x1xf32>
    %109 = arith.divf %107, %108 : vector<16x1xf32>
    %110 = vector.broadcast %109 : vector<16x1xf32> to vector<16x32xf32>
    %111 = arith.subf %103, %110 : vector<16x32xf32>
    %112 = arith.mulf %111, %111 : vector<16x32xf32>
    %cst_39 = arith.constant dense<0.000000e+00> : vector<16xf32>
    %113 = vector.multi_reduction <add>, %112, %cst_39 [1] : vector<16x32xf32> to vector<16xf32>
    %114 = vector.shape_cast %113 : vector<16xf32> to vector<16x1xf32>
    %cst_40 = arith.constant 3.200000e+01 : f32
    %115 = vector.broadcast %cst_40 : f32 to vector<16x1xf32>
    %116 = arith.divf %114, %115 : vector<16x1xf32>
    %117 = vector.broadcast %109 : vector<16x1xf32> to vector<16x32xf32>
    %118 = arith.subf %103, %117 : vector<16x32xf32>
    %cst_41 = arith.constant 9.99999974E-6 : f32
    %119 = vector.broadcast %cst_41 : f32 to vector<16x1xf32>
    %120 = arith.addf %116, %119 : vector<16x1xf32>
    %121 = math.rsqrt %120 : vector<16x1xf32>
    %122 = vector.broadcast %121 : vector<16x1xf32> to vector<16x32xf32>
    %123 = arith.mulf %118, %122 : vector<16x32xf32>
    %124 = vector.broadcast %104 : vector<1x32xf32> to vector<16x32xf32>
    %125 = arith.mulf %123, %124 : vector<16x32xf32>
    %126 = vector.broadcast %105 : vector<1x32xf32> to vector<16x32xf32>
    %127 = arith.addf %125, %126 : vector<16x32xf32>
    %128 = vector.shape_cast %127 : vector<16x32xf32> to vector<2x8x32xf32>
    %c0_42 = arith.constant 0 : index
    %c0_43 = arith.constant 0 : index
    %c0_44 = arith.constant 0 : index
    %129 = vector.load %arg10[%c0_42, %c0_43, %c0_44] : memref<2x8x32xf32, #tpu.memory_space<vmem>>, vector<2x8x32xf32>
    tpu.vector_store %arg10[%c0_42, %c0_43, %c0_44], %128 {strides = array<i32>} : memref<2x8x32xf32, #tpu.memory_space<vmem>>, vector<2x8x32xf32>,
    return
  }
  func.func @transform_0(%arg0: i32) -> (i32, i32) {
    %c0_i32 = arith.constant 0 : i32
    %c0_i32_0 = arith.constant 0 : i32
    return %arg0, %c0_i32 : i32, i32
  }
  func.func @transform_1(%arg0: i32) -> (i32, i32, i32) {
    %c0_i32 = arith.constant 0 : i32
    %c0_i32_0 = arith.constant 0 : i32
    %c0_i32_1 = arith.constant 0 : i32
    return %arg0, %c0_i32, %c0_i32_0 : i32, i32, i32
  }
  func.func @transform_2(%arg0: i32) -> (i32, i32) {
    %c0_i32 = arith.constant 0 : i32
    %c0_i32_0 = arith.constant 0 : i32
    %c0_i32_1 = arith.constant 0 : i32
    return %c0_i32, %c0_i32_0 : i32, i32
  }
  func.func @transform_3(%arg0: i32) -> (i32, i32) {
    %c0_i32 = arith.constant 0 : i32
    %c0_i32_0 = arith.constant 0 : i32
    %c0_i32_1 = arith.constant 0 : i32
    return %c0_i32, %c0_i32_0 : i32, i32
  }
  func.func @transform_4(%arg0: i32) -> (i32, i32) {
    %c0_i32 = arith.constant 0 : i32
    %c0_i32_0 = arith.constant 0 : i32
    %c0_i32_1 = arith.constant 0 : i32
    return %c0_i32, %c0_i32_0 : i32, i32
  }
  func.func @transform_5(%arg0: i32) -> (i32, i32) {
    %c0_i32 = arith.constant 0 : i32
    %c0_i32_0 = arith.constant 0 : i32
    %c0_i32_1 = arith.constant 0 : i32
    return %c0_i32, %c0_i32_0 : i32, i32
  }
  func.func @transform_6(%arg0: i32) -> (i32, i32) {
    %c0_i32 = arith.constant 0 : i32
    %c0_i32_0 = arith.constant 0 : i32
    %c0_i32_1 = arith.constant 0 : i32
    return %c0_i32, %c0_i32_0 : i32, i32
  }
  func.func @transform_7(%arg0: i32) -> (i32, i32) {
    %c0_i32 = arith.constant 0 : i32
    %c0_i32_0 = arith.constant 0 : i32
    %c0_i32_1 = arith.constant 0 : i32
    return %c0_i32, %c0_i32_0 : i32, i32
  }
  func.func @transform_8(%arg0: i32) -> (i32, i32) {
    %c0_i32 = arith.constant 0 : i32
    %c0_i32_0 = arith.constant 0 : i32
    %c0_i32_1 = arith.constant 0 : i32
    return %c0_i32, %c0_i32_0 : i32, i32
  }
  func.func @transform_9(%arg0: i32) -> (i32, i32, i32) {
    %c0_i32 = arith.constant 0 : i32
    %c0_i32_0 = arith.constant 0 : i32
    %c0_i32_1 = arith.constant 0 : i32
    return %arg0, %c0_i32, %c0_i32_0 : i32, i32, i32
  }
}

</mosaic_0001>

<llo_original>
// kernel: tpu_custom_call.1
$region0: #{tpu_custom_call.1}
  #allocation0 [shape = 'u32[]', space=smem, size = 0x4, offset = 0x4, fixed_abs, tag = 'smem constant byte address 0x4 - core index']
  #allocation1 [shape = 'u32[72,128]{1,0:T(1,128)}', space=vmem, size = 0x9000, scoped, tag = 'internal scratch']
  %s0 = inlined_call_operand.vmem [shape: f32[64,8], index: 0, kind: input, shape index: {}]
  %s1 = inlined_call_operand.vmem [shape: f32[2,8,32], index: 1, kind: input, shape index: {}]
  %s2 = inlined_call_operand.vmem [shape: bf16[8,16], index: 2, kind: input, shape index: {}]
  %s3 = inlined_call_operand.vmem [shape: bf16[16,8], index: 3, kind: input, shape index: {}]
  %s4 = inlined_call_operand.vmem [shape: bf16[8,16], index: 4, kind: input, shape index: {}]
  %s5 = inlined_call_operand.vmem [shape: bf16[16,32], index: 5, kind: input, shape index: {}]
  %s6 = inlined_call_operand.vmem [shape: bf16[32,64], index: 6, kind: input, shape index: {}]
  %s7 = inlined_call_operand.vmem [shape: bf16[64,32], index: 7, kind: input, shape index: {}]
  %s8 = inlined_call_operand.vmem [shape: f32[12,64], index: 8, kind: input, shape index: {}]
  %s9 = inlined_call_operand.hbm [shape: f32[2,8,32], index: 9, kind: output, shape index: {}]
  %s10 = sld [smem:[#allocation0]]
  $region46: #{tpu_custom_call.1} parent=0
    _
  %s12 = ssub.s32 1, %s10
  %s13 = scalar_select 0, %s12, %s10
  $region1: #{tpu_custom_call.1} parent=0
    #allocation2 [shape = 'u8[8192]{0}', space=vmem, size = 0x2000, scoped, tag = 'output window, operand 0, single buffered']
    #allocation3 [shape = 's32[1]{0}', space=sflag, size = 0x4, scoped, tag = 'scoped memory for tpu_custom_call.1']
    %14 = vsyncpa [#allocation3], 0
    // Predicated region
    $region2: #{tpu_custom_call.1} parent=1 // pred_check
      _
    $region3: #{tpu_custom_call.1} parent=1 // pred_check_branch
      %16 = sbr.rel (0) target = $region5
    $region4: #{tpu_custom_call.1} parent=1 // pred_region
      _
    $region5: #{tpu_custom_call.1} parent=1 // pred_fallthru
      _
    // Predicated region
    $region6: #{tpu_custom_call.1} parent=1 // pred_check
      _
    $region7: #{tpu_custom_call.1} parent=1 // pred_check_branch
      %18 = sbr.rel (0) target = $region9
    $region8: #{tpu_custom_call.1} parent=1 // pred_region
      _
    $region9: #{tpu_custom_call.1} parent=1 // pred_fallthru
      _
    // Predicated region
    $region10: #{tpu_custom_call.1} parent=1 // pred_check
      _
    $region11: #{tpu_custom_call.1} parent=1 // pred_check_branch
      %20 = sbr.rel (0) target = $region13
    $region12: #{tpu_custom_call.1} parent=1 // pred_region
      _
    $region13: #{tpu_custom_call.1} parent=1 // pred_fallthru
      _
    // Predicated region
    $region14: #{tpu_custom_call.1} parent=1 // pred_check
      _
    $region15: #{tpu_custom_call.1} parent=1 // pred_check_branch
      %22 = sbr.rel (0) target = $region17
    $region16: #{tpu_custom_call.1} parent=1 // pred_region
      _
    $region17: #{tpu_custom_call.1} parent=1 // pred_fallthru
      _
    // Predicated region
    $region18: #{tpu_custom_call.1} parent=1 // pred_check
      _
    $region19: #{tpu_custom_call.1} parent=1 // pred_check_branch
      %24 = sbr.rel (0) target = $region21
    $region20: #{tpu_custom_call.1} parent=1 // pred_region
      _
    $region21: #{tpu_custom_call.1} parent=1 // pred_fallthru
      _
    // Predicated region
    $region22: #{tpu_custom_call.1} parent=1 // pred_check
      _
    $region23: #{tpu_custom_call.1} parent=1 // pred_check_branch
      %26 = sbr.rel (0) target = $region25
    $region24: #{tpu_custom_call.1} parent=1 // pred_region
      _
    $region25: #{tpu_custom_call.1} parent=1 // pred_fallthru
      _
    // Predicated region
    $region26: #{tpu_custom_call.1} parent=1 // pred_check
      _
    $region27: #{tpu_custom_call.1} parent=1 // pred_check_branch
      %28 = sbr.rel (0) target = $region29
    $region28: #{tpu_custom_call.1} parent=1 // pred_region
      _
    $region29: #{tpu_custom_call.1} parent=1 // pred_fallthru
      _
    // Predicated region
    $region30: #{tpu_custom_call.1} parent=1 // pred_check
      _
    $region31: #{tpu_custom_call.1} parent=1 // pred_check_branch
      %30 = sbr.rel (0) target = $region33
    $region32: #{tpu_custom_call.1} parent=1 // pred_region
      _
    $region33: #{tpu_custom_call.1} parent=1 // pred_fallthru
      _
    // Predicated region
    $region34: #{tpu_custom_call.1} parent=1 // pred_check
      _
    $region35: #{tpu_custom_call.1} parent=1 // pred_check_branch
      %32 = sbr.rel (0) target = $region37
    $region36: #{tpu_custom_call.1} parent=1 // pred_region
      _
    $region37: #{tpu_custom_call.1} parent=1 // pred_fallthru
      _
    %v34 = vld [vmem:[%s8] sm:$0xff]
    %v35 = vld [vmem:[%s8 + $0x8] sm:$0xf]
    %v36 = vld [vmem:[%s0] sm:$0xff]
    %v37 = vld [vmem:[%s0 + $0x8] sm:$0xff]
    %v38 = vld [vmem:[%s0 + $0x10] sm:$0xff]
    %v39 = vld [vmem:[%s0 + $0x18] sm:$0xff]
    %v40 = vld [vmem:[%s0 + $0x20] sm:$0xff]
    %v41 = vld [vmem:[%s0 + $0x28] sm:$0xff]
    %v42 = vld [vmem:[%s0 + $0x30] sm:$0xff]
    %v43 = vld [vmem:[%s0 + $0x38] sm:$0xff]
    %v44 = vpack.c.bf16 %v37, %v36
    %v45 = vpack.c.bf16 %v39, %v38
    %v46 = vpack.c.bf16 %v41, %v40
    %v47 = vpack.c.bf16 %v43, %v42
    %v48 = vld [vmem:[%s2] sm:$0xf]
    %v49 = vperm.slane %v34, 0
    %vm50 = vcmask 64512
    %v52 = vsel %vm50, %v44, 0
    %v55 = vsel %vm50, %v45, 0
    %v58 = vsel %vm50, %v46, 0
    %v61 = vsel %vm50, %v47, 0
    %vm63 = vcmask 1043456
    %v65 = vsel %vm63, %v48, 0
    %67 = vmatpush.bf16.msra.mxu0 0
    %68 = vmatpush.bf16.msra.mxu0 0
    %69 = vmatpush.bf16.msra.mxu0 0
    %70 = vmatpush.bf16.msra.mxu0 0
    %71 = vmatpush.bf16.msra.mxu0 0
    %72 = vmatpush.bf16.msra.mxu0 0
    %73 = vmatpush.bf16.msra.mxu0 0
    %74 = vmatpush.bf16.msra.mxu0 %v65
    %75 = vmatmul.bf16.gmra.mxu0 %v52
    %v76 = vpop.f32.mrf.mxu0
    %v77 = vadd.f32 %v49, %v76
    %v78 = vpop.f32.mrf.mxu0
    %v79 = vadd.f32 %v49, %v78
    %80 = vmatmul.bf16.gmra.mxu0 %v55
    %v81 = vpop.f32.mrf.mxu0
    %v82 = vadd.f32 %v49, %v81
    %v83 = vpop.f32.mrf.mxu0
    %v84 = vadd.f32 %v49, %v83
    %85 = vmatmul.bf16.gmra.mxu0 %v58
    %v86 = vpop.f32.mrf.mxu0
    %v87 = vadd.f32 %v49, %v86
    %v88 = vpop.f32.mrf.mxu0
    %v89 = vadd.f32 %v49, %v88
    %90 = vmatmul.bf16.gmra.mxu0 %v61
    %v91 = vpop.f32.mrf.mxu0
    %v92 = vadd.f32 %v49, %v91
    %v93 = vpop.f32.mrf.mxu0
    %v94 = vadd.f32 %v49, %v93
    %95 = vdwg.mxu0
    %v96 = vmax.f32 %v77, 0.0
    %v97 = vmax.f32 %v79, 0.0
    %v98 = vmax.f32 %v82, 0.0
    %v99 = vmax.f32 %v84, 0.0
    %v100 = vmax.f32 %v87, 0.0
    %v101 = vmax.f32 %v89, 0.0
    %v102 = vmax.f32 %v92, 0.0
    %v103 = vmax.f32 %v94, 0.0
    %v104 = vpack.c.bf16 %v97, %v96
    %v105 = vpack.c.bf16 %v99, %v98
    %v106 = vpack.c.bf16 %v101, %v100
    %v107 = vpack.c.bf16 %v103, %v102
    %v108 = vld [vmem:[%s3] sm:$0xf]
    %v109 = vld [vmem:[%s3 + $0x4] sm:$0xf]
    %v110 = vperm.slane %v34, 1
    %v113 = vunpack.c.l.b16 %v108
    %v114 = vunpack.c.l.b16 %v109
    %v115 = vpack.c.b16 %v114, %v113
    %vm117 = vcmask 130048
    %v119 = vsel %vm117, %v104, 0
    %v122 = vsel %vm117, %v105, 0
    %v125 = vsel %vm117, %v106, 0
    %v128 = vsel %vm117, %v107, 0
    %130 = vmatpush.bf16.msra.mxu0 0
    %131 = vmatpush.bf16.msra.mxu0 0
    %132 = vmatpush.bf16.msra.mxu0 0
    %133 = vmatpush.bf16.msra.mxu0 0
    %134 = vmatpush.bf16.msra.mxu0 0
    %135 = vmatpush.bf16.msra.mxu0 0
    %136 = vmatpush.bf16.msra.mxu0 0
    %137 = vmatpush.bf16.msra.mxu0 %v115
    %138 = vmatmul.bf16.gmra.mxu0 %v119
    %v139 = vpop.f32.mrf.mxu0
    %v140 = vadd.f32 %v110, %v139
    %v141 = vpop.f32.mrf.mxu0
    %v142 = vadd.f32 %v110, %v141
    %143 = vmatmul.bf16.gmra.mxu0 %v122
    %v144 = vpop.f32.mrf.mxu0
    %v145 = vadd.f32 %v110, %v144
    %v146 = vpop.f32.mrf.mxu0
    %v147 = vadd.f32 %v110, %v146
    %148 = vmatmul.bf16.gmra.mxu0 %v125
    %v149 = vpop.f32.mrf.mxu0
    %v150 = vadd.f32 %v110, %v149
    %v151 = vpop.f32.mrf.mxu0
    %v152 = vadd.f32 %v110, %v151
    %153 = vmatmul.bf16.gmra.mxu0 %v128
    %v154 = vpop.f32.mrf.mxu0
    %v155 = vadd.f32 %v110, %v154
    %v156 = vpop.f32.mrf.mxu0
    %v157 = vadd.f32 %v110, %v156
    %158 = vdwg.mxu0
    %v159 = vadd.f32 %v140, %v36
    %v160 = vadd.f32 %v142, %v37
    %v161 = vadd.f32 %v145, %v38
    %v162 = vadd.f32 %v147, %v39
    %v163 = vadd.f32 %v150, %v40
    %v164 = vadd.f32 %v152, %v41
    %v165 = vadd.f32 %v155, %v42
    %v166 = vadd.f32 %v157, %v43
    %167 = vxpose.xlu0.b32.start [1/16] %v159, 128
    %168 = vxpose.xlu0.b32.cont [2/16] %v160, 128
    %169 = vxpose.xlu0.b32.cont [3/16] %v161, 128
    %170 = vxpose.xlu0.b32.cont [4/16] %v162, 128
    %171 = vxpose.xlu0.b32.cont [5/16] 0.0, 128
    %172 = vxpose.xlu0.b32.cont [6/16] 0.0, 128
    %173 = vxpose.xlu0.b32.cont [7/16] 0.0, 128
    %174 = vxpose.xlu0.b32.cont [8/16] 0.0, 128
    %175 = vxpose.xlu0.b32.cont [9/16] 0.0, 128
    %176 = vxpose.xlu0.b32.cont [10/16] 0.0, 128
    %177 = vxpose.xlu0.b32.cont [11/16] 0.0, 128
    %178 = vxpose.xlu0.b32.cont [12/16] 0.0, 128
    %179 = vxpose.xlu0.b32.cont [13/16] 0.0, 128
    %180 = vxpose.xlu0.b32.cont [14/16] 0.0, 128
    %181 = vxpose.xlu0.b32.cont [15/16] 0.0, 128
    %182 = vxpose.xlu0.b32.end [16/16] 0.0, 128
    %v183 = vpop.trf.xlu0
    %v184 = vpop.trf.xlu0
    %v185 = vpop.trf.xlu0
    %v186 = vpop.trf.xlu0
    %v187 = vpop.trf.xlu0
    %v188 = vpop.trf.xlu0
    %v189 = vpop.trf.xlu0
    %v190 = vpop.trf.xlu0
    %v191 = vpop.trf.xlu0
    %v192 = vpop.trf.xlu0
    %v193 = vpop.trf.xlu0
    %v194 = vpop.trf.xlu0
    %v195 = vpop.trf.xlu0
    %v196 = vpop.trf.xlu0
    %v197 = vpop.trf.xlu0
    %v198 = vpop.trf.xlu0
    %199 = vxpose.xlu0.b32.start [1/16] %v163, 128
    %200 = vxpose.xlu0.b32.cont [2/16] %v164, 128
    %201 = vxpose.xlu0.b32.cont [3/16] %v165, 128
    %202 = vxpose.xlu0.b32.cont [4/16] %v166, 128
    %203 = vxpose.xlu0.b32.cont [5/16] 0.0, 128
    %204 = vxpose.xlu0.b32.cont [6/16] 0.0, 128
    %205 = vxpose.xlu0.b32.cont [7/16] 0.0, 128
    %206 = vxpose.xlu0.b32.cont [8/16] 0.0, 128
    %207 = vxpose.xlu0.b32.cont [9/16] 0.0, 128
    %208 = vxpose.xlu0.b32.cont [10/16] 0.0, 128
    %209 = vxpose.xlu0.b32.cont [11/16] 0.0, 128
    %210 = vxpose.xlu0.b32.cont [12/16] 0.0, 128
    %211 = vxpose.xlu0.b32.cont [13/16] 0.0, 128
    %212 = vxpose.xlu0.b32.cont [14/16] 0.0, 128
    %213 = vxpose.xlu0.b32.cont [15/16] 0.0, 128
    %214 = vxpose.xlu0.b32.end [16/16] 0.0, 128
    %v215 = vpop.trf.xlu0
    %v216 = vpop.trf.xlu0
    %v217 = vpop.trf.xlu0
    %v218 = vpop.trf.xlu0
    %v219 = vpop.trf.xlu0
    %v220 = vpop.trf.xlu0
    %v221 = vpop.trf.xlu0
    %v222 = vpop.trf.xlu0
    %v223 = vpop.trf.xlu0
    %v224 = vpop.trf.xlu0
    %v225 = vpop.trf.xlu0
    %v226 = vpop.trf.xlu0
    %v227 = vpop.trf.xlu0
    %v228 = vpop.trf.xlu0
    %v229 = vpop.trf.xlu0
    %v230 = vpop.trf.xlu0
    %vm231 = vcmask 261120
    %v232 = vsel %vm231, %v183, 0.0
    %233 = vadd.xlane.f32.xlu0 %v232
    %v234 = vpop.xlane.xlu0 %233
    %v235 = vsel %vm231, %v215, 0.0
    %236 = vadd.xlane.f32.xlu0 %v235
    %v237 = vpop.xlane.xlu0 %236
    %v238 = vrcp.pop 32.0
    %v239 = vmul.f32 32.0, %v238
    %v240 = vsub.f32 1.0, %v239
    %v241 = vmul.f32 %v238, %v240
    %v242 = vadd.f32 %v238, %v241
    %vm243 = vweird.f32 %v238
    %v244 = vsel %vm243, %v238, %v242
    %v245 = vmul.f32 %v234, %v244
    %v246 = vmul.f32 %v237, %v244
    %v247 = vsub.f32 %v183, %v245
    %v248 = vsub.f32 %v215, %v246
    %v249 = vmul.f32 %v247, %v247
    %v250 = vmul.f32 %v248, %v248
    %v251 = vsel %vm231, %v249, 0.0
    %252 = vadd.xlane.f32.xlu0 %v251
    %v253 = vpop.xlane.xlu0 %252
    %v254 = vsel %vm231, %v250, 0.0
    %255 = vadd.xlane.f32.xlu0 %v254
    %v256 = vpop.xlane.xlu0 %255
    %v257 = vmul.f32 %v253, %v244
    %v258 = vmul.f32 %v256, %v244
    %v259 = vadd.f32 %v257, 1e-05
    %v260 = vadd.f32 %v258, 1e-05
    %v261 = vrsqrt.pop %v259
    %v262 = vmul.f32 %v261, %v259
    %v263 = vmul.f32 %v262, %v261
    %v264 = vmul.f32 0.5, %v263
    %v265 = vsub.f32 1.5, %v264
    %v266 = vmul.f32 %v261, %v265
    %vm267 = vweird.f32 %v259
    %vm268 = vweird.f32 %v261
    %vm269 = vmor %vm267, %vm268
    %v270 = vsel %vm269, %v261, %v266
    %v271 = vrsqrt.pop %v260
    %v272 = vmul.f32 %v271, %v260
    %v273 = vmul.f32 %v272, %v271
    %v274 = vmul.f32 0.5, %v273
    %v275 = vsub.f32 1.5, %v274
    %v276 = vmul.f32 %v271, %v275
    %vm277 = vweird.f32 %v260
    %vm278 = vweird.f32 %v271
    %vm279 = vmor %vm277, %vm278
    %v280 = vsel %vm279, %v271, %v276
    %v281 = vmul.f32 %v247, %v270
    %v282 = vmul.f32 %v248, %v280
    %v283 = vperm.slane %v34, 6
    %v284 = vmul.f32 %v281, %v283
    %v285 = vmul.f32 %v282, %v283
    %v286 = vperm.slane %v34, 7
    %v287 = vadd.f32 %v284, %v286
    %v288 = vadd.f32 %v285, %v286
    %v289 = vpack.c.bf16 %v287, %v287
    %v290 = vpack.c.bf16 %v288, %v288
    %v291 = vld [vmem:[%s1] sm:$0xff]
    %v292 = vld [vmem:[%s1 + $0x8] sm:$0xff]
    %v293 = vpack.c.bf16 %v291, %v291
    %v294 = vpack.c.bf16 %v292, %v292
    %v296 = vsel %vm231, %v289, 0
    %v299 = vsel %vm231, %v293, 0
    %301 = vmatpush.bf16.xpose.msra.mxu0 0
    %302 = vmatpush.bf16.xpose.msra.mxu0 0
    %303 = vmatpush.bf16.xpose.msra.mxu0 0
    %304 = vmatpush.bf16.xpose.msra.mxu0 0
    %305 = vmatpush.bf16.xpose.msra.mxu0 0
    %306 = vmatpush.bf16.xpose.msra.mxu0 0
    %307 = vmatpush.bf16.xpose.msra.mxu0 0
    %308 = vmatpush.bf16.xpose.msra.mxu0 %v299
    %309 = vmatmul.bf16.gmra.mxu0 %v296
    %v310 = vpop.f32.mrf.mxu0
    %v311 = vadd.f32 0.0, %v310
    %v312 = vpop.f32.mrf.mxu0
    %313 = vdwg.mxu0
    %v315 = vsel %vm231, %v290, 0
    %v318 = vsel %vm231, %v294, 0
    %320 = vmatpush.bf16.xpose.msra.mxu0 0
    %321 = vmatpush.bf16.xpose.msra.mxu0 0
    %322 = vmatpush.bf16.xpose.msra.mxu0 0
    %323 = vmatpush.bf16.xpose.msra.mxu0 0
    %324 = vmatpush.bf16.xpose.msra.mxu0 0
    %325 = vmatpush.bf16.xpose.msra.mxu0 0
    %326 = vmatpush.bf16.xpose.msra.mxu0 0
    %327 = vmatpush.bf16.xpose.msra.mxu0 %v318
    %328 = vmatmul.bf16.gmra.mxu0 %v315
    %v329 = vpop.f32.mrf.mxu0
    %v330 = vadd.f32 0.0, %v329
    %v331 = vpop.f32.mrf.mxu0
    %332 = vdwg.mxu0
    %v333 = vpack.c.bf16 %v330, %v311
    %v334 = vld [vmem:[%s4] sm:$0xf]
    %v335 = vperm.slane %v34, 2
    %v337 = vsel %vm50, %v333, 0
    %v340 = vsel %vm63, %v334, 0
    %342 = vmatpush.bf16.msra.mxu0 0
    %343 = vmatpush.bf16.msra.mxu0 0
    %344 = vmatpush.bf16.msra.mxu0 0
    %345 = vmatpush.bf16.msra.mxu0 0
    %346 = vmatpush.bf16.msra.mxu0 0
    %347 = vmatpush.bf16.msra.mxu0 0
    %348 = vmatpush.bf16.msra.mxu0 0
    %349 = vmatpush.bf16.msra.mxu0 %v340
    %350 = vmatmul.bf16.gmra.mxu0 %v337
    %v351 = vpop.f32.mrf.mxu0
    %v352 = vadd.f32 %v335, %v351
    %v353 = vpop.f32.mrf.mxu0
    %v354 = vadd.f32 %v335, %v353
    %355 = vdwg.mxu0
    %v356 = vmax.f32 %v352, 0.0
    %v357 = vmax.f32 %v354, 0.0
    %v358 = vpack.c.bf16 %v357, %v356
    %v359 = vld [vmem:[%s5] sm:$0xf]
    %v360 = vld [vmem:[%s5 + $0x4] sm:$0xf]
    %v361 = vperm.slane %v34, 3
    %v364 = vunpack.c.l.b16 %v359
    %v365 = vunpack.c.l.b16 %v360
    %v366 = vpack.c.b16 %v365, %v364
    %v369 = vsel %vm117, %v358, 0
    %371 = vmatpush.bf16.msra.mxu0 0
    %372 = vmatpush.bf16.msra.mxu0 0
    %373 = vmatpush.bf16.msra.mxu0 0
    %374 = vmatpush.bf16.msra.mxu0 0
    %375 = vmatpush.bf16.msra.mxu0 0
    %376 = vmatpush.bf16.msra.mxu0 0
    %377 = vmatpush.bf16.msra.mxu0 0
    %378 = vmatpush.bf16.msra.mxu0 %v366
    %379 = vmatmul.bf16.gmra.mxu0 %v369
    %v380 = vpop.f32.mrf.mxu0
    %v381 = vadd.f32 %v361, %v380
    %v382 = vpop.f32.mrf.mxu0
    %v383 = vadd.f32 %v361, %v382
    %384 = vdwg.mxu0
    %v385 = vadd.f32 %v381, %v287
    %v386 = vadd.f32 %v383, %v288
    %v387 = vsel %vm231, %v385, 0.0
    %388 = vadd.xlane.f32.xlu0 %v387
    %v389 = vpop.xlane.xlu0 %388
    %v390 = vsel %vm231, %v386, 0.0
    %391 = vadd.xlane.f32.xlu0 %v390
    %v392 = vpop.xlane.xlu0 %391
    %v393 = vmul.f32 %v389, %v244
    %v394 = vmul.f32 %v392, %v244
    %v395 = vsub.f32 %v385, %v393
    %v396 = vsub.f32 %v386, %v394
    %v397 = vmul.f32 %v395, %v395
    %v398 = vmul.f32 %v396, %v396
    %v399 = vsel %vm231, %v397, 0.0
    %400 = vadd.xlane.f32.xlu0 %v399
    %v401 = vpop.xlane.xlu0 %400
    %v402 = vsel %vm231, %v398, 0.0
    %403 = vadd.xlane.f32.xlu0 %v402
    %v404 = vpop.xlane.xlu0 %403
    %v405 = vmul.f32 %v401, %v244
    %v406 = vmul.f32 %v404, %v244
    %v407 = vadd.f32 %v405, 1e-05
    %v408 = vadd.f32 %v406, 1e-05
    %v409 = vrsqrt.pop %v407
    %v410 = vmul.f32 %v409, %v407
    %v411 = vmul.f32 %v410, %v409
    %v412 = vmul.f32 0.5, %v411
    %v413 = vsub.f32 1.5, %v412
    %v414 = vmul.f32 %v409, %v413
    %vm415 = vweird.f32 %v407
    %vm416 = vweird.f32 %v409
    %vm417 = vmor %vm415, %vm416
    %v418 = vsel %vm417, %v409, %v414
    %v419 = vrsqrt.pop %v408
    %v420 = vmul.f32 %v419, %v408
    %v421 = vmul.f32 %v420, %v419
    %v422 = vmul.f32 0.5, %v421
    %v423 = vsub.f32 1.5, %v422
    %v424 = vmul.f32 %v419, %v423
    %vm425 = vweird.f32 %v408
    %vm426 = vweird.f32 %v419
    %vm427 = vmor %vm425, %vm426
    %v428 = vsel %vm427, %v419, %v424
    %v429 = vmul.f32 %v395, %v418
    %v430 = vmul.f32 %v396, %v428
    %v431 = vperm.slane %v35, 0
    %v432 = vmul.f32 %v429, %v431
    %v433 = vmul.f32 %v430, %v431
    %v434 = vperm.slane %v35, 1
    %v435 = vadd.f32 %v432, %v434
    %v436 = vadd.f32 %v433, %v434
    %v437 = vpack.c.bf16 %v436, %v435
    %v438 = vld [vmem:[%s6] sm:$0xf]
    %v439 = vld [vmem:[%s6 + $0x4] sm:$0xf]
    %v440 = vld [vmem:[%s6 + $0x8] sm:$0xf]
    %v441 = vld [vmem:[%s6 + $0xc] sm:$0xf]
    %v442 = vperm.slane %v34, 4
    %v447 = vunpack.c.l.b16 %v438
    %v448 = vunpack.c.l.b16 %v439
    %v449 = vunpack.c.l.b16 %v440
    %v450 = vunpack.c.l.b16 %v441
    %v451 = vpack.c.b16 %v448, %v447
    %v452 = vpack.c.b16 %v450, %v449
    %v456 = vsel %vm231, %v437, 0
    %458 = vmatpush.bf16.msra.mxu0 0
    %459 = vmatpush.bf16.msra.mxu0 0
    %460 = vmatpush.bf16.msra.mxu0 0
    %461 = vmatpush.bf16.msra.mxu0 0
    %462 = vmatpush.bf16.msra.mxu0 0
    %463 = vmatpush.bf16.msra.mxu0 0
    %464 = vmatpush.bf16.msra.mxu0 %v452
    %465 = vmatpush.bf16.msra.mxu0 %v451
    %466 = vmatmul.bf16.gmra.mxu0 %v456
    %v467 = vpop.f32.mrf.mxu0
    %v468 = vadd.f32 %v442, %v467
    %v469 = vpop.f32.mrf.mxu0
    %v470 = vadd.f32 %v442, %v469
    %471 = vdwg.mxu0
    %v472 = vmax.f32 %v468, 0.0
    %v473 = vmax.f32 %v470, 0.0
    %v474 = vpack.c.bf16 %v473, %v472
    %v475 = vld [vmem:[%s7] sm:$0xf]
    %v476 = vld [vmem:[%s7 + $0x4] sm:$0xf]
    %v477 = vld [vmem:[%s7 + $0x8] sm:$0xf]
    %v478 = vld [vmem:[%s7 + $0xc] sm:$0xf]
    %v479 = vld [vmem:[%s7 + $0x10] sm:$0xf]
    %v480 = vld [vmem:[%s7 + $0x14] sm:$0xf]
    %v481 = vld [vmem:[%s7 + $0x18] sm:$0xf]
    %v482 = vld [vmem:[%s7 + $0x1c] sm:$0xf]
    %v483 = vperm.slane %v34, 5
    %v492 = vunpack.c.l.b16 %v475
    %v493 = vunpack.c.l.b16 %v476
    %v494 = vunpack.c.l.b16 %v477
    %v495 = vunpack.c.l.b16 %v478
    %v496 = vunpack.c.l.b16 %v479
    %v497 = vunpack.c.l.b16 %v480
    %v498 = vunpack.c.l.b16 %v481
    %v499 = vunpack.c.l.b16 %v482
    %v500 = vpack.c.b16 %v493, %v492
    %v501 = vpack.c.b16 %v495, %v494
    %v502 = vpack.c.b16 %v497, %v496
    %v503 = vpack.c.b16 %v499, %v498
    %vm508 = vcmask 523264
    %v510 = vsel %vm508, %v474, 0
    %512 = vmatpush.bf16.msra.mxu0 0
    %513 = vmatpush.bf16.msra.mxu0 0
    %514 = vmatpush.bf16.msra.mxu0 0
    %515 = vmatpush.bf16.msra.mxu0 0
    %516 = vmatpush.bf16.msra.mxu0 %v503
    %517 = vmatpush.bf16.msra.mxu0 %v502
    %518 = vmatpush.bf16.msra.mxu0 %v501
    %519 = vmatpush.bf16.msra.mxu0 %v500
    %520 = vmatmul.bf16.gmra.mxu0 %v510
    %v521 = vpop.f32.mrf.mxu0
    %v522 = vadd.f32 %v483, %v521
    %v523 = vpop.f32.mrf.mxu0
    %v524 = vadd.f32 %v483, %v523
    %525 = vdwg.mxu0
    %v526 = vadd.f32 %v435, %v522
    %v527 = vadd.f32 %v436, %v524
    %v528 = vsel %vm231, %v526, 0.0
    %529 = vadd.xlane.f32.xlu0 %v528
    %v530 = vpop.xlane.xlu0 %529
    %v531 = vsel %vm231, %v527, 0.0
    %532 = vadd.xlane.f32.xlu0 %v531
    %v533 = vpop.xlane.xlu0 %532
    %v534 = vmul.f32 %v530, %v244
    %v535 = vmul.f32 %v533, %v244
    %v536 = vsub.f32 %v526, %v534
    %v537 = vsub.f32 %v527, %v535
    %v538 = vmul.f32 %v536, %v536
    %v539 = vmul.f32 %v537, %v537
    %v540 = vsel %vm231, %v538, 0.0
    %541 = vadd.xlane.f32.xlu0 %v540
    %v542 = vpop.xlane.xlu0 %541
    %v543 = vsel %vm231, %v539, 0.0
    %544 = vadd.xlane.f32.xlu0 %v543
    %v545 = vpop.xlane.xlu0 %544
    %v546 = vmul.f32 %v542, %v244
    %v547 = vmul.f32 %v545, %v244
    %v548 = vadd.f32 %v546, 1e-05
    %v549 = vadd.f32 %v547, 1e-05
    %v550 = vrsqrt.pop %v548
    %v551 = vmul.f32 %v550, %v548
    %v552 = vmul.f32 %v551, %v550
    %v553 = vmul.f32 0.5, %v552
    %v554 = vsub.f32 1.5, %v553
    %v555 = vmul.f32 %v550, %v554
    %vm556 = vweird.f32 %v548
    %vm557 = vweird.f32 %v550
    %vm558 = vmor %vm556, %vm557
    %v559 = vsel %vm558, %v550, %v555
    %v560 = vrsqrt.pop %v549
    %v561 = vmul.f32 %v560, %v549
    %v562 = vmul.f32 %v561, %v560
    %v563 = vmul.f32 0.5, %v562
    %v564 = vsub.f32 1.5, %v563
    %v565 = vmul.f32 %v560, %v564
    %vm566 = vweird.f32 %v549
    %vm567 = vweird.f32 %v560
    %vm568 = vmor %vm566, %vm567
    %v569 = vsel %vm568, %v560, %v565
    %v570 = vmul.f32 %v536, %v559
    %v571 = vmul.f32 %v537, %v569
    %v572 = vperm.slane %v35, 2
    %v573 = vmul.f32 %v570, %v572
    %v574 = vmul.f32 %v571, %v572
    %v575 = vperm.slane %v35, 3
    %v576 = vadd.f32 %v573, %v575
    %v577 = vadd.f32 %v574, %v575
    %578 = vst.msk [vmem:[#allocation2] sm:$0xff] %vm231, %v576
    %579 = vst.msk [vmem:[#allocation2 + $0x8] sm:$0xff] %vm231, %v577
    // Predicated region
    $region38: #{tpu_custom_call.1} parent=1 // pred_check
      _
    $region39: #{tpu_custom_call.1} parent=1 // pred_check_branch
      %581 = sbr.rel (0) target = $region41
    $region40: #{tpu_custom_call.1} parent=1 // pred_region
      %583 = vsyncadd [#allocation3], 0
      %s584 = sshll.u32 [#allocation2], 4
      %s585 = int_to_ptr.vmem [resolvable:$true] %s584
      %s586 = sshll.u32 %s9, 4
      %s587 = int_to_ptr.hbm [resolvable:$true] %s586
      %592 = dma.vmem_to_hbm [thread:$0]  %s585, 256, %s587, [#allocation3], 128, 128, 8
    $region41: #{tpu_custom_call.1} parent=1 // pred_fallthru
      _
    // Predicated region
    $region42: #{tpu_custom_call.1} parent=1 // pred_check
      _
    $region43: #{tpu_custom_call.1} parent=1 // pred_check_branch
      %594 = sbr.rel (0) target = $region45
    $region44: #{tpu_custom_call.1} parent=1 // pred_region
      %596 = dma.done [#allocation3], 256
    $region45: #{tpu_custom_call.1} parent=1 // pred_fallthru
      _
    %597 = vsyncpa [#allocation3], 1

</llo_original>
